<compile_context>
chip_gen: v7x
topology: tpu7x:2x2x1
jax: 0.10.0
libtpu: 0.0.40
codegen_flags: <defaults>
</compile_context>

<pallas_src>
import jax
import jax.numpy as jnp
from jax.experimental import pallas as pl
from jax.experimental.pallas import tpu as pltpu


def _dtrelu_kernel(bias_ref, x_ref, o_ref):
    x = x_ref[...]                      # (TR, THW)
    bias = bias_ref[...]                # (TR, 1), broadcasts along lanes
    zero = jnp.zeros((), dtype=x.dtype)
    # Exact rewrite of the relu/sign formula given bias >= 0.
    o_ref[...] = jnp.where(jnp.abs(x) > bias, x, zero)


def _pick_tile(dim, align, max_tile):
    """Largest multiple of `align` that divides `dim` and is <= max_tile.

    Falls back to the full extent (always a legal block size) if `dim` is
    small or has no suitable divisor.
    """
    if dim <= max_tile:
        return dim
    t = (max_tile // align) * align
    while t >= align:
        if dim % t == 0:
            return t
        t -= align
    return dim


def dtrelu(x, filters, alpha=8.0 / 255):
    """x: (N, C, H, W), filters: (C, C_in, kh, kw)."""
    N, C, H, W = x.shape
    assert filters.shape[0] == C
    # The single-select rewrite is exact only for bias >= 0 (alpha >= 0).
    assert alpha >= 0, "dtrelu Pallas kernel assumes alpha >= 0"

    HW = H * W
    R = N * C

    # Hoisted bias: per-channel |filters| reduction in f32, then replicated
    # across the batch so it lines up with the (N*C, HW) row layout.
    bias_c = alpha * jnp.sum(jnp.abs(filters.astype(jnp.float32)), axis=(1, 2, 3))  # (C,)
    bias = jnp.tile(bias_c, (N,)).astype(x.dtype).reshape(R, 1)                     # (N*C, 1)

    x2 = x.reshape(R, HW)

    # Tile sizes: rows in multiples of 8 (sublanes), HW in multiples of 128
    # (lanes). Max block ~256*2048*4B = 2 MiB -> ~8 MiB double-buffered for
    # in+out, comfortably inside VMEM on v5e/v6e/v7x.
    TR = _pick_tile(R, 8, 256)
    THW = _pick_tile(HW, 128, 2048)
    grid = (R // TR, HW // THW)

    itemsize = jnp.dtype(x.dtype).itemsize
    cost = pl.CostEstimate(
        flops=3 * R * HW,
        transcendentals=0,
        bytes_accessed=(2 * R * HW) * itemsize + R * itemsize,
    )

    out2 = pl.pallas_call(
        _dtrelu_kernel,
        out_shape=jax.ShapeDtypeStruct((R, HW), x.dtype),
        grid_spec=pltpu.PrefetchScalarGridSpec(
            num_scalar_prefetch=0,
            grid=grid,
            in_specs=[
                pl.BlockSpec((TR, 1), lambda r, h: (r, 0)),     # bias (resident per row-block)
                pl.BlockSpec((TR, THW), lambda r, h: (r, h)),   # x tile
            ],
            out_specs=pl.BlockSpec((TR, THW), lambda r, h: (r, h)),
        ),
        compiler_params=pltpu.CompilerParams(
            dimension_semantics=("parallel", "parallel"),
            vmem_limit_bytes=64 * 1024 * 1024,
        ),
        cost_estimate=cost,
    )(bias, x2)

    return out2.reshape(N, C, H, W)


def _dtrelu_ref(x, filters, alpha=8.0 / 255):
    """Pure-JAX reference implementing the original PyTorch formula verbatim."""
    bias = alpha * jnp.sum(jnp.abs(filters), axis=(1, 2, 3))[None, :, None, None]
    pos = jax.nn.relu(x - bias)
    neg = jax.nn.relu(-x - bias)
    return pos + bias * jnp.sign(pos) - neg - bias * jnp.sign(neg)


if __name__ == "__main__":
    key = jax.random.PRNGKey(0)
    k1, k2 = jax.random.split(key)

    # Small shapes consistent with the module's forward: NCHW activations plus
    # a conv filter bank whose out-channel count matches x's channel dim.
    N, C, H, W = 2, 4, 16, 16
    C_in, kh, kw = 3, 3, 3

    x = jax.random.normal(k1, (N, C, H, W), dtype=jnp.float32)
    filters = jax.random.normal(k2, (C, C_in, kh, kw), dtype=jnp.float32) * 0.1

    out = dtrelu(x, filters)
    out = jax.block_until_ready(out)

    ref = _dtrelu_ref(x, filters)
    assert out.shape == (N, C, H, W)
    assert jnp.allclose(out, ref, atol=1e-5, rtol=1e-5), "mismatch vs reference"

    print("KERNEL_OK")
</pallas_src>

<mosaic_0001>
module attributes {stable_mosaic.version = 11 : i64} {
  func.func @_dtrelu_kernel(%arg0: i32, %arg1: i32, %arg2: memref<8x1xf32, #tpu.memory_space<vmem>>, %arg3: memref<8x256xf32, #tpu.memory_space<vmem>>, %arg4: memref<8x256xf32, #tpu.memory_space<vmem>>) attributes {dimension_semantics = [#tpu.dimension_semantics<parallel>, #tpu.dimension_semantics<parallel>], iteration_bounds = array<i64: 1, 1>, scalar_prefetch = 0 : i64, scratch_operands = 0 : i64, tpu.core_type = #tpu.core_type<tc>, window_params = [{transform_indices = @transform_0, window_bounds = array<i64: 8, 1>}, {transform_indices = @transform_1, window_bounds = array<i64: 8, 256>}, {transform_indices = @transform_2, window_bounds = array<i64: 8, 256>}]} {
    %c0 = arith.constant 0 : index
    %c0_0 = arith.constant 0 : index
    %0 = vector.load %arg3[%c0, %c0_0] : memref<8x256xf32, #tpu.memory_space<vmem>>, vector<8x256xf32>
    %c0_1 = arith.constant 0 : index
    %c0_2 = arith.constant 0 : index
    %1 = vector.load %arg2[%c0_1, %c0_2] : memref<8x1xf32, #tpu.memory_space<vmem>>, vector<8x1xf32>
    %2 = math.absf %0 : vector<8x256xf32>
    %3 = vector.broadcast %1 : vector<8x1xf32> to vector<8x256xf32>
    %4 = arith.cmpf ogt, %2, %3 : vector<8x256xf32>
    %cst = arith.constant 0.000000e+00 : f32
    %5 = vector.broadcast %cst : f32 to vector<8x256xf32>
    %6 = arith.select %4, %0, %5 : vector<8x256xi1>, vector<8x256xf32>
    %c0_3 = arith.constant 0 : index
    %c0_4 = arith.constant 0 : index
    %7 = vector.load %arg4[%c0_3, %c0_4] : memref<8x256xf32, #tpu.memory_space<vmem>>, vector<8x256xf32>
    tpu.vector_store %arg4[%c0_3, %c0_4], %6 {strides = array<i32>} : memref<8x256xf32, #tpu.memory_space<vmem>>, vector<8x256xf32>,
    return
  }
  func.func @transform_0(%arg0: i32, %arg1: i32) -> (i32, i32) {
    %c0_i32 = arith.constant 0 : i32
    %c0_i32_0 = arith.constant 0 : i32
    return %arg0, %c0_i32 : i32, i32
  }
  func.func @transform_1(%arg0: i32, %arg1: i32) -> (i32, i32) {
    %c0_i32 = arith.constant 0 : i32
    return %arg0, %arg1 : i32, i32
  }
  func.func @transform_2(%arg0: i32, %arg1: i32) -> (i32, i32) {
    %c0_i32 = arith.constant 0 : i32
    return %arg0, %arg1 : i32, i32
  }
}

</mosaic_0001>

<llo_original>
// kernel: tpu_custom_call.1
$region0: #{tpu_custom_call.1}
  #allocation0 [shape = 'u32[]', space=smem, size = 0x4, offset = 0x4, fixed_abs, tag = 'smem constant byte address 0x4 - core index']
  #allocation1 [shape = 'u32[144,128]{1,0:T(1,128)}', space=vmem, size = 0x12000, scoped, tag = 'internal scratch']
  %s0 = inlined_call_operand.hbm [shape: f32[8,1], index: 0, kind: input, shape index: {}]
  %s1 = inlined_call_operand.hbm [shape: f32[8,256], index: 1, kind: input, shape index: {}]
  %s2 = inlined_call_operand.hbm [shape: f32[8,256], index: 2, kind: output, shape index: {}]
  %s3 = sld [smem:[#allocation0]]
  $region26: #{tpu_custom_call.1} parent=0
    _
  %s5 = ssub.s32 1, %s3
  %s6 = scalar_select 0, %s5, %s3
  $region1: #{tpu_custom_call.1} parent=0
    #allocation2 [shape = 'u8[4096]{0}', space=vmem, size = 0x1000, scoped, tag = 'input window, operand 0, single buffered']
    #allocation3 [shape = 's32[1]{0}', space=sflag, size = 0x4, scoped, tag = 'scoped memory for tpu_custom_call.1']
    #allocation4 [shape = 's32[1]{0}', space=sflag, size = 0x4, scoped, tag = 'scoped memory for tpu_custom_call.1']
    #allocation5 [shape = 'u8[8192]{0}', space=vmem, size = 0x2000, scoped, tag = 'input window, operand 1, single buffered']
    #allocation6 [shape = 's32[1]{0}', space=sflag, size = 0x4, scoped, tag = 'scoped memory for tpu_custom_call.1']
    #allocation7 [shape = 'u8[8192]{0}', space=vmem, size = 0x2000, scoped, tag = 'output window, operand 0, single buffered']
    %7 = vsyncpa [#allocation3], 0
    %8 = vsyncpa [#allocation6], 0
    %9 = vsyncpa [#allocation4], 0
    // Predicated region
    $region2: #{tpu_custom_call.1} parent=1 // pred_check
      _
    $region3: #{tpu_custom_call.1} parent=1 // pred_check_branch
      %11 = sbr.rel (0) target = $region5
    $region4: #{tpu_custom_call.1} parent=1 // pred_region
      %s13 = ssub.s32 128, 128
      %14 = vsyncadd [#allocation3], %s13
      %s16 = sshll.u32 [#allocation2], 4
      %s17 = int_to_ptr.vmem [resolvable:$true] %s16
      %19 = dma.hbm_to_vmem [thread:$0]  %s0, 128, %s17, [#allocation3]
    $region5: #{tpu_custom_call.1} parent=1 // pred_fallthru
      _
    // Predicated region
    $region6: #{tpu_custom_call.1} parent=1 // pred_check
      _
    $region7: #{tpu_custom_call.1} parent=1 // pred_check_branch
      %21 = sbr.rel (0) target = $region9
    $region8: #{tpu_custom_call.1} parent=1 // pred_region
      %s23 = ssub.s32 256, 256
      %24 = vsyncadd [#allocation6], %s23
      %s26 = sshll.u32 [#allocation5], 4
      %s27 = int_to_ptr.vmem [resolvable:$true] %s26
      %29 = dma.hbm_to_vmem [thread:$0]  %s1, 256, %s27, [#allocation6]
    $region9: #{tpu_custom_call.1} parent=1 // pred_fallthru
      _
    // Predicated region
    $region10: #{tpu_custom_call.1} parent=1 // pred_check
      _
    $region11: #{tpu_custom_call.1} parent=1 // pred_check_branch
      %31 = sbr.rel (0) target = $region13
    $region12: #{tpu_custom_call.1} parent=1 // pred_region
      %32 = dma.done [#allocation3], 128
    $region13: #{tpu_custom_call.1} parent=1 // pred_fallthru
      _
    // Predicated region
    $region14: #{tpu_custom_call.1} parent=1 // pred_check
      _
    $region15: #{tpu_custom_call.1} parent=1 // pred_check_branch
      %34 = sbr.rel (0) target = $region17
    $region16: #{tpu_custom_call.1} parent=1 // pred_region
      %35 = dma.done [#allocation6], 256
    $region17: #{tpu_custom_call.1} parent=1 // pred_fallthru
      _
    %v36 = vld [vmem:[#allocation5] sm:$0xff]
    %v37 = vld [vmem:[#allocation5 + $0x8] sm:$0xff]
    %v38 = vld [vmem:[#allocation2] sm:$0xff]
    %v39 = vand.u32 2147483647, %v36
    %v40 = vand.u32 2147483647, %v37
    %42 = vset.pattern.permute.xlu0 0
    %43 = vperm.xlu0 %42, %v38
    %v44 = vpop.permute.xlu0 %43
    %vm46 = vcmp.gt.f32.partialorder %v39, %v44
    %vm47 = vcmp.gt.f32.partialorder %v40, %v44
    %v48 = vsel %vm46, %v36, 0.0
    %v49 = vsel %vm47, %v37, 0.0
    %50 = vst [vmem:[#allocation7] sm:$0xff] %v48
    %51 = vst [vmem:[#allocation7 + $0x8] sm:$0xff] %v49
    // Predicated region
    $region18: #{tpu_custom_call.1} parent=1 // pred_check
      _
    $region19: #{tpu_custom_call.1} parent=1 // pred_check_branch
      %53 = sbr.rel (0) target = $region21
    $region20: #{tpu_custom_call.1} parent=1 // pred_region
      %s55 = ssub.s32 256, 256
      %56 = vsyncadd [#allocation4], %s55
      %s58 = sshll.u32 [#allocation7], 4
      %s59 = int_to_ptr.vmem [resolvable:$true] %s58
      %61 = dma.vmem_to_hbm [thread:$0]  %s59, 256, %s2, [#allocation4]
    $region21: #{tpu_custom_call.1} parent=1 // pred_fallthru
      _
    // Predicated region
    $region22: #{tpu_custom_call.1} parent=1 // pred_check
      _
    $region23: #{tpu_custom_call.1} parent=1 // pred_check_branch
      %63 = sbr.rel (0) target = $region25
    $region24: #{tpu_custom_call.1} parent=1 // pred_region
      %64 = dma.done [#allocation4], 256
    $region25: #{tpu_custom_call.1} parent=1 // pred_fallthru
      _
    %65 = vsyncpa [#allocation3], 1
    %66 = vsyncpa [#allocation6], 1
    %67 = vsyncpa [#allocation4], 1

</llo_original>
